<compile_context>
chip_gen: v7x
topology: tpu7x:2x2x1
jax: 0.10.0
libtpu: 0.0.40
codegen_flags: <defaults>
</compile_context>

<pallas_src>
import math

import jax
import jax.numpy as jnp
from jax.experimental import pallas as pl
from jax.experimental.pallas import tpu as pltpu

LOG_EPS = math.log(1e-6)  # torch.tensor(1e-06).log()

_TB = 128                      # batch tile (lane axis)
_M_CHUNK_BUDGET = 4 << 20      # bytes allowed for the [mc, L, TB] intermediate
_VMEM_LIMIT = 32 * 1024 * 1024 # explicit scoped-VMEM limit (safe on v5e/v6e/v7x)


def _choose_m_chunk(L, TB, budget_bytes=_M_CHUNK_BUDGET):
    """Chunk size along the m axis so mc*L*TB*4 stays under the budget."""
    full = L * L * TB * 4
    if full <= budget_bytes:
        return L
    mc = budget_bytes // (L * TB * 4)
    mc = max(8, (mc // 8) * 8)  # keep sublane-aligned chunks
    return min(mc, L)


def _make_listmle_kernel(L, TB, MC):
    chunks = [(m0, min(MC, L - m0)) for m0 in range(0, L, MC)]

    def kernel(tie_ref, logits_ref, target_ref, masks_ref, out_ref):
        # [L, TB] tiles: list positions on sublanes, batch examples on lanes.
        logits = logits_ref[...].astype(jnp.float32)
        target = target_ref[...].astype(jnp.float32)
        masks = masks_ref[...].astype(jnp.float32)
        tie = tie_ref[...]  # [L, L] f32 0/1, tie[m, j] = (m >= j)

        # target = target * masks ; input = input + (1 - masks) * log(1e-6)
        target = target * masks
        logits = logits + (1.0 - masks) * LOG_EPS

        # scores = where(masks, target, min(target, axis=list) - 1e-6)
        tmin = jnp.min(target, axis=0, keepdims=True)            # [1, TB]
        scores = jnp.where(masks > 0.5, target, tmin - 1e-6)     # [L, TB]

        # raw-max subtraction (permutation invariant)
        raw_max = jnp.max(logits, axis=0, keepdims=True)          # [1, TB]
        x = logits - raw_max                                      # [L, TB]
        ex = jnp.exp(x)                                           # [L, TB]

        s_j = scores[None, :, :]                                  # [1, L, TB]

        # S[j, b] = sum over m with rank(m) >= rank(j) of exp(x[m, b])
        # (== reverse-cumsum over the sorted logits of the reference).
        S = jnp.zeros((L, TB), jnp.float32)
        for m0, mc in chunks:
            s_m = scores[m0:m0 + mc][:, None, :]                  # [mc, 1, TB]
            ex_m = ex[m0:m0 + mc][:, None, :]                     # [mc, 1, TB]
            tie_m = tie[m0:m0 + mc, :][:, :, None] > 0.5          # [mc, L, 1]
            keep = (s_m < s_j) | ((s_m == s_j) & tie_m)           # [mc, L, TB]
            # leading-axis reduce -> pure elementwise accumulation (VALU)
            S = S + jnp.sum(jnp.where(keep, ex_m, 0.0), axis=0)   # [L, TB]

        per_item = jnp.log(S) - x                                 # [L, TB]
        out_ref[...] = jnp.sum(per_item, axis=0, keepdims=True)   # [1, TB]

    return kernel


def listmle_loss(input, target, masks, sample_weight=None, reduction="mean"):
    """Pallas ListMLE loss.  input/target/masks: [B, L]; sample_weight: [B]."""
    B, L = input.shape
    TB = _TB
    Bp = ((B + TB - 1) // TB) * TB
    pad = Bp - B

    dt = input.dtype
    # Native-dtype DMA (no f32 up-cast copies); batch goes on the lane axis.
    logits_t = jnp.transpose(input)              # [L, B]
    target_t = jnp.transpose(target.astype(dt))  # [L, B]
    masks_t = jnp.transpose(masks.astype(dt))    # [L, B]

    if pad:  # skip the pad copies entirely when B is already aligned
        pc = ((0, 0), (0, pad))
        logits_t = jnp.pad(logits_t, pc)
        target_t = jnp.pad(target_t, pc)
        masks_t = jnp.pad(masks_t, pc)

    # Static tie-break mask, hoisted out of the kernel: tie[m, j] = (m >= j).
    idx = jnp.arange(L, dtype=jnp.int32)
    tie = (idx[:, None] >= idx[None, :]).astype(jnp.float32)  # [L, L]

    MC = _choose_m_chunk(L, TB)
    kernel = _make_listmle_kernel(L, TB, MC)

    out = pl.pallas_call(
        kernel,
        out_shape=jax.ShapeDtypeStruct((1, Bp), jnp.float32),
        grid=(Bp // TB,),
        in_specs=[
            pl.BlockSpec((L, L), lambda i: (0, 0)),    # tie mask (resident)
            pl.BlockSpec((L, TB), lambda i: (0, i)),   # logits
            pl.BlockSpec((L, TB), lambda i: (0, i)),   # target
            pl.BlockSpec((L, TB), lambda i: (0, i)),   # masks
        ],
        out_specs=pl.BlockSpec((1, TB), lambda i: (0, i)),
        compiler_params=pltpu.CompilerParams(
            dimension_semantics=("parallel",),
            vmem_limit_bytes=_VMEM_LIMIT,
        ),
    )(tie, logits_t, target_t, masks_t)

    per_example = out[0, :B].astype(jnp.float32)          # [B]
    if sample_weight is not None:
        per_example = per_example * sample_weight.astype(jnp.float32)
    if reduction == "mean":
        return jnp.mean(per_example)
    # Matches the torch module: any other reduction returns the per-example
    # (optionally weighted) losses unreduced.
    return per_example


def _reference_loss(inp, tgt, msk, sw=None, reduction="mean"):
    """Pure-JAX reference (stable index tie-break, same as kernel)."""
    inp = inp.astype(jnp.float32)
    tgt = tgt.astype(jnp.float32)
    msk = msk.astype(jnp.float32)
    tgt = tgt * msk
    inp = inp + (1.0 - msk) * LOG_EPS
    scores = jnp.where(msk > 0.5, tgt, jnp.min(tgt, axis=1, keepdims=True) - 1e-6)
    order = jnp.argsort(-scores, axis=1, stable=True)
    sorted_logits = jnp.take_along_axis(inp, order, axis=1)
    sorted_logits = sorted_logits - jnp.max(sorted_logits, axis=1, keepdims=True)
    sums = jnp.flip(jnp.cumsum(jnp.flip(jnp.exp(sorted_logits), -1), axis=1), -1)
    sums = jnp.log(sums) - sorted_logits
    loss = jnp.sum(sums, axis=1)
    if sw is not None:
        loss = loss * sw.astype(jnp.float32)
    if reduction == "mean":
        return jnp.mean(loss)
    return loss


if __name__ == "__main__":
    key = jax.random.PRNGKey(0)

    # --- small case matching the module spec: batch=2, list_size=8 ---
    B, L = 2, 8
    k1, k2, k3 = jax.random.split(key, 3)
    logits = jax.random.normal(k1, (B, L), jnp.float32)
    target = jax.random.uniform(k2, (B, L), jnp.float32, 0.0, 5.0)
    masks = jnp.array(
        [[1, 1, 1, 1, 1, 1, 0, 0],
         [1, 1, 1, 1, 1, 0, 0, 0]], dtype=jnp.float32)
    sample_weight = jax.random.uniform(k3, (B,), jnp.float32, 0.5, 1.5)

    out = jax.block_until_ready(listmle_loss(logits, target, masks, sample_weight))
    ref = _reference_loss(logits, target, masks, sample_weight)
    assert jnp.allclose(out, ref, rtol=1e-5, atol=1e-5), (out, ref)

    # --- multi-tile + padding case (exercises grid > 1 and B % 128 != 0) ---
    B2, L2 = 200, 24
    k4, k5, k6 = jax.random.split(jax.random.PRNGKey(1), 3)
    logits2 = jax.random.normal(k4, (B2, L2), jnp.float32)
    target2 = jax.random.uniform(k5, (B2, L2), jnp.float32, 0.0, 5.0)
    masks2 = (jax.random.uniform(k6, (B2, L2)) > 0.3).astype(jnp.float32)

    out2 = jax.block_until_ready(listmle_loss(logits2, target2, masks2))
    ref2 = _reference_loss(logits2, target2, masks2)
    assert jnp.allclose(out2, ref2, rtol=1e-5, atol=1e-5), (out2, ref2)

    print("KERNEL_OK")
</pallas_src>

<mosaic_0001>
module attributes {stable_mosaic.version = 11 : i64} {
  func.func @kernel(%arg0: i32, %arg1: memref<8x8xf32, #tpu.memory_space<vmem>>, %arg2: memref<8x128xf32, #tpu.memory_space<vmem>>, %arg3: memref<8x128xf32, #tpu.memory_space<vmem>>, %arg4: memref<8x128xf32, #tpu.memory_space<vmem>>, %arg5: memref<1x128xf32, #tpu.memory_space<vmem>>) attributes {dimension_semantics = [#tpu.dimension_semantics<parallel>], iteration_bounds = array<i64: 1>, scalar_prefetch = 0 : i64, scratch_operands = 0 : i64, tpu.core_type = #tpu.core_type<tc>, window_params = [{pipeline_mode = #tpu.pipeline_mode<synchronous>, transform_indices = @transform_0, window_bounds = array<i64: 8, 8>}, {transform_indices = @transform_1, window_bounds = array<i64: 8, 128>}, {transform_indices = @transform_2, window_bounds = array<i64: 8, 128>}, {transform_indices = @transform_3, window_bounds = array<i64: 8, 128>}, {transform_indices = @transform_4, window_bounds = array<i64: 1, 128>}]} {
    %c0 = arith.constant 0 : index
    %c0_0 = arith.constant 0 : index
    %0 = vector.load %arg2[%c0, %c0_0] : memref<8x128xf32, #tpu.memory_space<vmem>>, vector<8x128xf32>
    %c0_1 = arith.constant 0 : index
    %c0_2 = arith.constant 0 : index
    %1 = vector.load %arg3[%c0_1, %c0_2] : memref<8x128xf32, #tpu.memory_space<vmem>>, vector<8x128xf32>
    %c0_3 = arith.constant 0 : index
    %c0_4 = arith.constant 0 : index
    %2 = vector.load %arg4[%c0_3, %c0_4] : memref<8x128xf32, #tpu.memory_space<vmem>>, vector<8x128xf32>
    %c0_5 = arith.constant 0 : index
    %c0_6 = arith.constant 0 : index
    %3 = vector.load %arg1[%c0_5, %c0_6] : memref<8x8xf32, #tpu.memory_space<vmem>>, vector<8x8xf32>
    %4 = arith.mulf %1, %2 : vector<8x128xf32>
    %cst = arith.constant 1.000000e+00 : f32
    %5 = vector.broadcast %cst : f32 to vector<8x128xf32>
    %6 = arith.subf %5, %2 : vector<8x128xf32>
    %cst_7 = arith.constant -13.8155107 : f32
    %7 = vector.broadcast %cst_7 : f32 to vector<8x128xf32>
    %8 = arith.mulf %6, %7 : vector<8x128xf32>
    %9 = arith.addf %0, %8 : vector<8x128xf32>
    %cst_8 = arith.constant dense<0x7F800000> : vector<128xf32>
    %10 = vector.multi_reduction <minimumf>, %4, %cst_8 [0] : vector<8x128xf32> to vector<128xf32>
    %11 = vector.shape_cast %10 : vector<128xf32> to vector<1x128xf32>
    %cst_9 = arith.constant 5.000000e-01 : f32
    %12 = vector.broadcast %cst_9 : f32 to vector<8x128xf32>
    %13 = arith.cmpf ogt, %2, %12 : vector<8x128xf32>
    %cst_10 = arith.constant 9.99999997E-7 : f32
    %14 = vector.broadcast %cst_10 : f32 to vector<1x128xf32>
    %15 = arith.subf %11, %14 : vector<1x128xf32>
    %16 = vector.shape_cast %15 : vector<1x128xf32> to vector<1x128xf32>
    %17 = vector.broadcast %16 : vector<1x128xf32> to vector<8x128xf32>
    %18 = arith.select %13, %4, %17 : vector<8x128xi1>, vector<8x128xf32>
    %cst_11 = arith.constant dense<0xFF800000> : vector<128xf32>
    %19 = vector.multi_reduction <maximumf>, %9, %cst_11 [0] : vector<8x128xf32> to vector<128xf32>
    %20 = vector.shape_cast %19 : vector<128xf32> to vector<1x128xf32>
    %21 = vector.broadcast %20 : vector<1x128xf32> to vector<8x128xf32>
    %22 = arith.subf %9, %21 : vector<8x128xf32>
    %23 = math.exp %22 : vector<8x128xf32>
    %24 = vector.shape_cast %18 : vector<8x128xf32> to vector<1x8x128xf32>
    %cst_12 = arith.constant 0.000000e+00 : f32
    %25 = vector.broadcast %cst_12 : f32 to vector<8x128xf32>
    %26 = vector.shape_cast %18 : vector<8x128xf32> to vector<8x1x128xf32>
    %27 = vector.shape_cast %23 : vector<8x128xf32> to vector<8x1x128xf32>
    %28 = vector.shape_cast %3 : vector<8x8xf32> to vector<8x8x1xf32>
    %cst_13 = arith.constant 5.000000e-01 : f32
    %29 = vector.broadcast %cst_13 : f32 to vector<8x8x1xf32>
    %30 = arith.cmpf ogt, %28, %29 : vector<8x8x1xf32>
    %31 = vector.broadcast %26 : vector<8x1x128xf32> to vector<8x8x128xf32>
    %32 = vector.broadcast %24 : vector<1x8x128xf32> to vector<8x8x128xf32>
    %33 = arith.cmpf olt, %31, %32 : vector<8x8x128xf32>
    %34 = vector.broadcast %26 : vector<8x1x128xf32> to vector<8x8x128xf32>
    %35 = vector.broadcast %24 : vector<1x8x128xf32> to vector<8x8x128xf32>
    %36 = arith.cmpf oeq, %34, %35 : vector<8x8x128xf32>
    %37 = vector.broadcast %30 : vector<8x8x1xi1> to vector<8x8x128xi1>
    %38 = arith.andi %36, %37 : vector<8x8x128xi1>
    %39 = arith.ori %33, %38 : vector<8x8x128xi1>
    %cst_14 = arith.constant 0.000000e+00 : f32
    %40 = vector.shape_cast %27 : vector<8x1x128xf32> to vector<8x1x128xf32>
    %41 = vector.broadcast %40 : vector<8x1x128xf32> to vector<8x8x128xf32>
    %42 = vector.broadcast %cst_14 : f32 to vector<8x8x128xf32>
    %43 = arith.select %39, %41, %42 : vector<8x8x128xi1>, vector<8x8x128xf32>
    %cst_15 = arith.constant dense<0.000000e+00> : vector<8x128xf32>
    %44 = vector.multi_reduction <add>, %43, %cst_15 [0] : vector<8x8x128xf32> to vector<8x128xf32>
    %45 = arith.addf %25, %44 : vector<8x128xf32>
    %46 = math.log %45 : vector<8x128xf32>
    %47 = arith.subf %46, %22 : vector<8x128xf32>
    %cst_16 = arith.constant dense<0.000000e+00> : vector<128xf32>
    %48 = vector.multi_reduction <add>, %47, %cst_16 [0] : vector<8x128xf32> to vector<128xf32>
    %49 = vector.shape_cast %48 : vector<128xf32> to vector<1x128xf32>
    %c0_17 = arith.constant 0 : index
    %c0_18 = arith.constant 0 : index
    %50 = vector.load %arg5[%c0_17, %c0_18] : memref<1x128xf32, #tpu.memory_space<vmem>>, vector<1x128xf32>
    tpu.vector_store %arg5[%c0_17, %c0_18], %49 {strides = array<i32>} : memref<1x128xf32, #tpu.memory_space<vmem>>, vector<1x128xf32>,
    return
  }
  func.func @transform_0(%arg0: i32) -> (i32, i32) {
    %c0_i32 = arith.constant 0 : i32
    %c0_i32_0 = arith.constant 0 : i32
    %c0_i32_1 = arith.constant 0 : i32
    return %c0_i32, %c0_i32_0 : i32, i32
  }
  func.func @transform_1(%arg0: i32) -> (i32, i32) {
    %c0_i32 = arith.constant 0 : i32
    %c0_i32_0 = arith.constant 0 : i32
    return %c0_i32, %arg0 : i32, i32
  }
  func.func @transform_2(%arg0: i32) -> (i32, i32) {
    %c0_i32 = arith.constant 0 : i32
    %c0_i32_0 = arith.constant 0 : i32
    return %c0_i32, %arg0 : i32, i32
  }
  func.func @transform_3(%arg0: i32) -> (i32, i32) {
    %c0_i32 = arith.constant 0 : i32
    %c0_i32_0 = arith.constant 0 : i32
    return %c0_i32, %arg0 : i32, i32
  }
  func.func @transform_4(%arg0: i32) -> (i32, i32) {
    %c0_i32 = arith.constant 0 : i32
    %c0_i32_0 = arith.constant 0 : i32
    return %c0_i32, %arg0 : i32, i32
  }
}

</mosaic_0001>

<llo_original>
// kernel: tpu_custom_call.1
$region0: #{tpu_custom_call.1}
  #allocation0 [shape = 'u32[]', space=smem, size = 0x4, offset = 0x4, fixed_abs, tag = 'smem constant byte address 0x4 - core index']
  #allocation1 [shape = 'u32[144,128]{1,0:T(1,128)}', space=vmem, size = 0x12000, scoped, tag = 'internal scratch']
  %s0 = inlined_call_operand.hbm [shape: f32[8,8], index: 0, kind: input, shape index: {}]
  %s1 = inlined_call_operand.hbm [shape: f32[8,128], index: 1, kind: input, shape index: {}]
  %s2 = inlined_call_operand.hbm [shape: f32[8,128], index: 2, kind: input, shape index: {}]
  %s3 = inlined_call_operand.vmem [shape: f32[8,128], index: 3, kind: input, shape index: {}]
  %s4 = inlined_call_operand.hbm [shape: f32[1,128], index: 4, kind: output, shape index: {}]
  %s5 = sld [smem:[#allocation0]]
  $region38: #{tpu_custom_call.1} parent=0
    _
  %s7 = ssub.s32 1, %s5
  %s8 = scalar_select 0, %s7, %s5
  $region1: #{tpu_custom_call.1} parent=0
    #allocation2 [shape = 'u8[4096]{0}', space=vmem, size = 0x1000, scoped, tag = 'input window, operand 0, single buffered']
    #allocation3 [shape = 's32[1]{0}', space=sflag, size = 0x4, scoped, tag = 'scoped memory for tpu_custom_call.1']
    #allocation4 [shape = 's32[1]{0}', space=sflag, size = 0x4, scoped, tag = 'scoped memory for tpu_custom_call.1']
    #allocation5 [shape = 'u8[4096]{0}', space=vmem, size = 0x1000, scoped, tag = 'input window, operand 1, single buffered']
    #allocation6 [shape = 's32[1]{0}', space=sflag, size = 0x4, scoped, tag = 'scoped memory for tpu_custom_call.1']
    #allocation7 [shape = 'u8[4096]{0}', space=vmem, size = 0x1000, scoped, tag = 'input window, operand 2, single buffered']
    #allocation8 [shape = 'u8[512]{0}', space=vmem, size = 0x400, scoped, tag = 'output window, operand 0, single buffered']
    %9 = vsyncpa [#allocation3], 0
    %10 = vsyncpa [#allocation6], 0
    %11 = vsyncpa [#allocation4], 0
    // Predicated region
    $region2: #{tpu_custom_call.1} parent=1 // pred_check
      _
    $region3: #{tpu_custom_call.1} parent=1 // pred_check_branch
      %13 = sbr.rel (0) target = $region5
    $region4: #{tpu_custom_call.1} parent=1 // pred_region
      %s15 = ssub.s32 128, 128
      %16 = vsyncadd [#allocation3], %s15
      %s18 = sshll.u32 [#allocation2], 4
      %s19 = int_to_ptr.vmem [resolvable:$true] %s18
      %21 = dma.hbm_to_vmem [thread:$0]  %s0, 128, %s19, [#allocation3]
    $region5: #{tpu_custom_call.1} parent=1 // pred_fallthru
      _
    // Predicated region
    $region6: #{tpu_custom_call.1} parent=1 // pred_check
      _
    $region7: #{tpu_custom_call.1} parent=1 // pred_check_branch
      %23 = sbr.rel (0) target = $region9
    $region8: #{tpu_custom_call.1} parent=1 // pred_region
      %s25 = ssub.s32 128, 128
      %26 = vsyncadd [#allocation6], %s25
      %s28 = sshll.u32 [#allocation5], 4
      %s29 = int_to_ptr.vmem [resolvable:$true] %s28
      %31 = dma.hbm_to_vmem [thread:$0]  %s1, 128, %s29, [#allocation6]
    $region9: #{tpu_custom_call.1} parent=1 // pred_fallthru
      _
    // Predicated region
    $region10: #{tpu_custom_call.1} parent=1 // pred_check
      _
    $region11: #{tpu_custom_call.1} parent=1 // pred_check_branch
      %33 = sbr.rel (0) target = $region13
    $region12: #{tpu_custom_call.1} parent=1 // pred_region
      %s35 = ssub.s32 128, 128
      %36 = vsyncadd [#allocation6], %s35
      %s38 = sshll.u32 [#allocation7], 4
      %s39 = int_to_ptr.vmem [resolvable:$true] %s38
      %41 = dma.hbm_to_vmem [thread:$0]  %s2, 128, %s39, [#allocation6]
    $region13: #{tpu_custom_call.1} parent=1 // pred_fallthru
      _
    // Predicated region
    $region14: #{tpu_custom_call.1} parent=1 // pred_check
      _
    $region15: #{tpu_custom_call.1} parent=1 // pred_check_branch
      %43 = sbr.rel (0) target = $region17
    $region16: #{tpu_custom_call.1} parent=1 // pred_region
      _
    $region17: #{tpu_custom_call.1} parent=1 // pred_fallthru
      _
    // Predicated region
    $region18: #{tpu_custom_call.1} parent=1 // pred_check
      _
    $region19: #{tpu_custom_call.1} parent=1 // pred_check_branch
      %45 = sbr.rel (0) target = $region21
    $region20: #{tpu_custom_call.1} parent=1 // pred_region
      %46 = dma.done [#allocation3], 128
    $region21: #{tpu_custom_call.1} parent=1 // pred_fallthru
      _
    // Predicated region
    $region22: #{tpu_custom_call.1} parent=1 // pred_check
      _
    $region23: #{tpu_custom_call.1} parent=1 // pred_check_branch
      %48 = sbr.rel (0) target = $region25
    $region24: #{tpu_custom_call.1} parent=1 // pred_region
      %49 = dma.done [#allocation6], 128
    $region25: #{tpu_custom_call.1} parent=1 // pred_fallthru
      _
    // Predicated region
    $region26: #{tpu_custom_call.1} parent=1 // pred_check
      _
    $region27: #{tpu_custom_call.1} parent=1 // pred_check_branch
      %51 = sbr.rel (0) target = $region29
    $region28: #{tpu_custom_call.1} parent=1 // pred_region
      %52 = dma.done [#allocation6], 128
    $region29: #{tpu_custom_call.1} parent=1 // pred_fallthru
      _
    %v53 = vld [vmem:[#allocation5] sm:$0xff]
    %v54 = vld [vmem:[#allocation7] sm:$0xff]
    %v55 = vld [vmem:[%s3] sm:$0xff]
    %v56 = vld [vmem:[#allocation2] sm:$0xff]
    %v57 = vmul.f32 %v54, %v55
    %v58 = vsub.f32 1.0, %v55
    %v59 = vmul.f32 %v58, -13.815511
    %v60 = vadd.f32 %v53, %v59
    %v61 = vrot.slane %v57, 4
    %v62 = vmin.f32 %v57, %v61
    %v63 = vrot.slane %v62, 2
    %v64 = vmin.f32 %v62, %v63
    %v65 = vrot.slane %v64, 1
    %v66 = vmin.f32 %v64, %v65
    %vm67 = vcmp.gt.f32.partialorder %v55, 0.5
    %v68 = vsub.f32 %v66, 1e-06
    %v69 = vsel %vm67, %v57, %v68
    %v70 = vrot.slane %v60, 4
    %v71 = vmax.f32 %v60, %v70
    %v72 = vrot.slane %v71, 2
    %v73 = vmax.f32 %v71, %v72
    %v74 = vrot.slane %v73, 1
    %v75 = vmax.f32 %v73, %v74
    %v76 = vsub.f32 %v60, %v75
    %v77 = vmul.f32 %v76, 1.442695
    %v78 = vpow.pop %v77
    %v80 = vcombine.high %v69, %v69
    %v82 = vunpack.c.l.s4 1966171168
    %v83 = vunpack.c.0.s8 %v82
    %v84 = vlaneseq
    %v85 = vshrl.u32 %v84, 7
    %v86 = vsub.s32 %v83, %v85
    %v87 = vrot.slane %v69, %v86
    %v89 = vunpack.c.l.s4 1966171168
    %v90 = vunpack.c.0.s8 %v89
    %v91 = vlaneseq
    %v92 = vshrl.u32 %v91, 7
    %v93 = vsub.s32 %v90, %v92
    %v94 = vrot.slane %v80, %v93
    %v95 = vcombine.high %v87, %v87
    %v96 = vcombine.high %v94, %v94
    %v98 = vunpack.c.l.s4 1966171168
    %v99 = vunpack.c.0.s8 %v98
    %v100 = vlaneseq
    %v101 = vshrl.u32 %v100, 7
    %v102 = vsub.s32 %v99, %v101
    %v103 = vrot.slane %v87, %v102
    %v105 = vunpack.c.l.s4 1966171168
    %v106 = vunpack.c.0.s8 %v105
    %v107 = vlaneseq
    %v108 = vshrl.u32 %v107, 7
    %v109 = vsub.s32 %v106, %v108
    %v110 = vrot.slane %v94, %v109
    %v112 = vunpack.c.l.s4 1966171168
    %v113 = vunpack.c.0.s8 %v112
    %v114 = vlaneseq
    %v115 = vshrl.u32 %v114, 7
    %v116 = vsub.s32 %v113, %v115
    %v117 = vrot.slane %v95, %v116
    %v119 = vunpack.c.l.s4 1966171168
    %v120 = vunpack.c.0.s8 %v119
    %v121 = vlaneseq
    %v122 = vshrl.u32 %v121, 7
    %v123 = vsub.s32 %v120, %v122
    %v124 = vrot.slane %v96, %v123
    %v125 = vcombine.high %v103, %v103
    %v126 = vcombine.high %v110, %v110
    %v127 = vcombine.high %v117, %v117
    %v128 = vcombine.high %v124, %v124
    %v130 = vcombine.high %v78, %v78
    %v132 = vunpack.c.l.s4 1966171168
    %v133 = vunpack.c.0.s8 %v132
    %v134 = vlaneseq
    %v135 = vshrl.u32 %v134, 7
    %v136 = vsub.s32 %v133, %v135
    %v137 = vrot.slane %v78, %v136
    %v139 = vunpack.c.l.s4 1966171168
    %v140 = vunpack.c.0.s8 %v139
    %v141 = vlaneseq
    %v142 = vshrl.u32 %v141, 7
    %v143 = vsub.s32 %v140, %v142
    %v144 = vrot.slane %v130, %v143
    %v145 = vcombine.high %v137, %v137
    %v146 = vcombine.high %v144, %v144
    %v148 = vunpack.c.l.s4 1966171168
    %v149 = vunpack.c.0.s8 %v148
    %v150 = vlaneseq
    %v151 = vshrl.u32 %v150, 7
    %v152 = vsub.s32 %v149, %v151
    %v153 = vrot.slane %v137, %v152
    %v155 = vunpack.c.l.s4 1966171168
    %v156 = vunpack.c.0.s8 %v155
    %v157 = vlaneseq
    %v158 = vshrl.u32 %v157, 7
    %v159 = vsub.s32 %v156, %v158
    %v160 = vrot.slane %v144, %v159
    %v162 = vunpack.c.l.s4 1966171168
    %v163 = vunpack.c.0.s8 %v162
    %v164 = vlaneseq
    %v165 = vshrl.u32 %v164, 7
    %v166 = vsub.s32 %v163, %v165
    %v167 = vrot.slane %v145, %v166
    %v169 = vunpack.c.l.s4 1966171168
    %v170 = vunpack.c.0.s8 %v169
    %v171 = vlaneseq
    %v172 = vshrl.u32 %v171, 7
    %v173 = vsub.s32 %v170, %v172
    %v174 = vrot.slane %v146, %v173
    %v175 = vcombine.high %v153, %v153
    %v176 = vcombine.high %v160, %v160
    %v177 = vcombine.high %v167, %v167
    %v178 = vcombine.high %v174, %v174
    %v179 = vlaneseq
    %v180 = vshrl.u32 %v179, 7
    %v181 = vsub.s32 0, %v180
    %v182 = vrot.slane %v56, %v181
    %184 = vbcast.lane.b32.xlu0 %v182, 256
    %v185 = vpop.permute.xlu0 %184
    %v186 = vlaneseq
    %v187 = vshrl.u32 %v186, 7
    %v188 = vsub.s32 1, %v187
    %v189 = vrot.slane %v56, %v188
    %191 = vbcast.lane.b32.xlu0 %v189, 256
    %v192 = vpop.permute.xlu0 %191
    %v193 = vlaneseq
    %v194 = vshrl.u32 %v193, 7
    %v195 = vsub.s32 2, %v194
    %v196 = vrot.slane %v56, %v195
    %198 = vbcast.lane.b32.xlu0 %v196, 256
    %v199 = vpop.permute.xlu0 %198
    %v200 = vlaneseq
    %v201 = vshrl.u32 %v200, 7
    %v202 = vsub.s32 3, %v201
    %v203 = vrot.slane %v56, %v202
    %205 = vbcast.lane.b32.xlu0 %v203, 256
    %v206 = vpop.permute.xlu0 %205
    %v207 = vlaneseq
    %v208 = vshrl.u32 %v207, 7
    %v209 = vsub.s32 4, %v208
    %v210 = vrot.slane %v56, %v209
    %212 = vbcast.lane.b32.xlu0 %v210, 256
    %v213 = vpop.permute.xlu0 %212
    %v214 = vlaneseq
    %v215 = vshrl.u32 %v214, 7
    %v216 = vsub.s32 5, %v215
    %v217 = vrot.slane %v56, %v216
    %219 = vbcast.lane.b32.xlu0 %v217, 256
    %v220 = vpop.permute.xlu0 %219
    %v221 = vlaneseq
    %v222 = vshrl.u32 %v221, 7
    %v223 = vsub.s32 6, %v222
    %v224 = vrot.slane %v56, %v223
    %226 = vbcast.lane.b32.xlu0 %v224, 256
    %v227 = vpop.permute.xlu0 %226
    %v228 = vlaneseq
    %v229 = vshrl.u32 %v228, 7
    %v230 = vsub.s32 7, %v229
    %v231 = vrot.slane %v56, %v230
    %233 = vbcast.lane.b32.xlu0 %v231, 256
    %v234 = vpop.permute.xlu0 %233
    %vm235 = vcmp.gt.f32.partialorder %v185, 0.5
    %vm236 = vcmp.gt.f32.partialorder %v192, 0.5
    %vm237 = vcmp.gt.f32.partialorder %v199, 0.5
    %vm238 = vcmp.gt.f32.partialorder %v206, 0.5
    %vm239 = vcmp.gt.f32.partialorder %v213, 0.5
    %vm240 = vcmp.gt.f32.partialorder %v220, 0.5
    %vm241 = vcmp.gt.f32.partialorder %v227, 0.5
    %vm242 = vcmp.gt.f32.partialorder %v234, 0.5
    %v243 = vlaneseq
    %v244 = vshrl.u32 %v243, 7
    %v245 = vsub.s32 0, %v244
    %v246 = vrot.slane %v103, %v245
    %v247 = vlaneseq
    %v248 = vshrl.u32 %v247, 7
    %v249 = vsub.s32 0, %v248
    %v250 = vrot.slane %v117, %v249
    %v251 = vlaneseq
    %v252 = vshrl.u32 %v251, 7
    %v253 = vsub.s32 0, %v252
    %v254 = vrot.slane %v125, %v253
    %v255 = vlaneseq
    %v256 = vshrl.u32 %v255, 7
    %v257 = vsub.s32 0, %v256
    %v258 = vrot.slane %v127, %v257
    %v259 = vlaneseq
    %v260 = vshrl.u32 %v259, 7
    %v261 = vsub.s32 0, %v260
    %v262 = vrot.slane %v110, %v261
    %v263 = vlaneseq
    %v264 = vshrl.u32 %v263, 7
    %v265 = vsub.s32 0, %v264
    %v266 = vrot.slane %v124, %v265
    %v267 = vlaneseq
    %v268 = vshrl.u32 %v267, 7
    %v269 = vsub.s32 0, %v268
    %v270 = vrot.slane %v126, %v269
    %v271 = vlaneseq
    %v272 = vshrl.u32 %v271, 7
    %v273 = vsub.s32 0, %v272
    %v274 = vrot.slane %v128, %v273
    %vm283 = vcmp.lt.f32.partialorder %v246, %v69
    %vm284 = vcmp.lt.f32.partialorder %v250, %v69
    %vm285 = vcmp.lt.f32.partialorder %v254, %v69
    %vm286 = vcmp.lt.f32.partialorder %v258, %v69
    %vm287 = vcmp.lt.f32.partialorder %v262, %v69
    %vm288 = vcmp.lt.f32.partialorder %v266, %v69
    %vm289 = vcmp.lt.f32.partialorder %v270, %v69
    %vm290 = vcmp.lt.f32.partialorder %v274, %v69
    %vm291 = vcmp.eq.f32.partialorder %v246, %v69
    %vm292 = vcmp.eq.f32.partialorder %v250, %v69
    %vm293 = vcmp.eq.f32.partialorder %v254, %v69
    %vm294 = vcmp.eq.f32.partialorder %v258, %v69
    %vm295 = vcmp.eq.f32.partialorder %v262, %v69
    %vm296 = vcmp.eq.f32.partialorder %v266, %v69
    %vm297 = vcmp.eq.f32.partialorder %v270, %v69
    %vm298 = vcmp.eq.f32.partialorder %v274, %v69
    %v299 = vsel %vm235, 1, 0
    %v300 = vsel %vm236, 1, 0
    %v301 = vsel %vm237, 1, 0
    %v302 = vsel %vm238, 1, 0
    %v303 = vsel %vm239, 1, 0
    %v304 = vsel %vm240, 1, 0
    %v305 = vsel %vm241, 1, 0
    %v306 = vsel %vm242, 1, 0
    %vm307 = vcmp.eq.s32.totalorder %v299, 1
    %vm308 = vcmp.eq.s32.totalorder %v300, 1
    %vm309 = vcmp.eq.s32.totalorder %v301, 1
    %vm310 = vcmp.eq.s32.totalorder %v302, 1
    %vm311 = vcmp.eq.s32.totalorder %v303, 1
    %vm312 = vcmp.eq.s32.totalorder %v304, 1
    %vm313 = vcmp.eq.s32.totalorder %v305, 1
    %vm314 = vcmp.eq.s32.totalorder %v306, 1
    %vm315 = vmand %vm291, %vm307
    %vm316 = vmand %vm292, %vm308
    %vm317 = vmand %vm293, %vm309
    %vm318 = vmand %vm294, %vm310
    %vm319 = vmand %vm295, %vm311
    %vm320 = vmand %vm296, %vm312
    %vm321 = vmand %vm297, %vm313
    %vm322 = vmand %vm298, %vm314
    %vm323 = vmor %vm283, %vm315
    %vm324 = vmor %vm284, %vm316
    %vm325 = vmor %vm285, %vm317
    %vm326 = vmor %vm286, %vm318
    %vm327 = vmor %vm287, %vm319
    %vm328 = vmor %vm288, %vm320
    %vm329 = vmor %vm289, %vm321
    %vm330 = vmor %vm290, %vm322
    %v331 = vlaneseq
    %v332 = vshrl.u32 %v331, 7
    %v333 = vsub.s32 0, %v332
    %v334 = vrot.slane %v153, %v333
    %v335 = vlaneseq
    %v336 = vshrl.u32 %v335, 7
    %v337 = vsub.s32 0, %v336
    %v338 = vrot.slane %v167, %v337
    %v339 = vlaneseq
    %v340 = vshrl.u32 %v339, 7
    %v341 = vsub.s32 0, %v340
    %v342 = vrot.slane %v175, %v341
    %v343 = vlaneseq
    %v344 = vshrl.u32 %v343, 7
    %v345 = vsub.s32 0, %v344
    %v346 = vrot.slane %v177, %v345
    %v347 = vlaneseq
    %v348 = vshrl.u32 %v347, 7
    %v349 = vsub.s32 0, %v348
    %v350 = vrot.slane %v160, %v349
    %v351 = vlaneseq
    %v352 = vshrl.u32 %v351, 7
    %v353 = vsub.s32 0, %v352
    %v354 = vrot.slane %v174, %v353
    %v355 = vlaneseq
    %v356 = vshrl.u32 %v355, 7
    %v357 = vsub.s32 0, %v356
    %v358 = vrot.slane %v176, %v357
    %v359 = vlaneseq
    %v360 = vshrl.u32 %v359, 7
    %v361 = vsub.s32 0, %v360
    %v362 = vrot.slane %v178, %v361
    %v371 = vsel %vm323, %v334, 0.0
    %v372 = vsel %vm324, %v338, 0.0
    %v373 = vsel %vm325, %v342, 0.0
    %v374 = vsel %vm326, %v346, 0.0
    %v375 = vsel %vm327, %v350, 0.0
    %v376 = vsel %vm328, %v354, 0.0
    %v377 = vsel %vm329, %v358, 0.0
    %v378 = vsel %vm330, %v362, 0.0
    %v379 = vadd.f32 %v371, %v372
    %v380 = vadd.f32 %v379, %v373
    %v381 = vadd.f32 %v380, %v374
    %v382 = vadd.f32 %v381, %v375
    %v383 = vadd.f32 %v382, %v376
    %v384 = vadd.f32 %v383, %v377
    %v385 = vadd.f32 %v384, %v378
    %v386 = vadd.f32 %v385, 0.0
    %v387 = vlog2.pop %v386
    %v388 = vmul.f32 %v387, 0.6931472
    %v389 = vsub.f32 %v388, %v76
    %v390 = vrot.slane %v389, 4
    %v391 = vadd.f32 %v389, %v390
    %v392 = vrot.slane %v391, 2
    %v393 = vadd.f32 %v391, %v392
    %v394 = vrot.slane %v393, 1
    %v395 = vadd.f32 %v393, %v394
    %396 = vst [vmem:[#allocation8] sm:$0x1] %v395
    // Predicated region
    $region30: #{tpu_custom_call.1} parent=1 // pred_check
      _
    $region31: #{tpu_custom_call.1} parent=1 // pred_check_branch
      %398 = sbr.rel (0) target = $region33
    $region32: #{tpu_custom_call.1} parent=1 // pred_region
      %s400 = ssub.s32 16, 16
      %401 = vsyncadd [#allocation4], %s400
      %s403 = sshll.u32 [#allocation8], 4
      %s404 = int_to_ptr.vmem [resolvable:$true] %s403
      %406 = dma.vmem_to_hbm [thread:$0]  %s404, 16, %s4, [#allocation4]
    $region33: #{tpu_custom_call.1} parent=1 // pred_fallthru
      _
    // Predicated region
    $region34: #{tpu_custom_call.1} parent=1 // pred_check
      _
    $region35: #{tpu_custom_call.1} parent=1 // pred_check_branch
      %408 = sbr.rel (0) target = $region37
    $region36: #{tpu_custom_call.1} parent=1 // pred_region
      %409 = dma.done [#allocation4], 16
    $region37: #{tpu_custom_call.1} parent=1 // pred_fallthru
      _
    %410 = vsyncpa [#allocation3], 1
    %411 = vsyncpa [#allocation6], 1
    %412 = vsyncpa [#allocation4], 1

</llo_original>
